<compile_context>
chip_gen: v5e
topology: v5e:2x2
jax: 0.10.0
libtpu: 0.0.40
codegen_flags: <defaults>
</compile_context>

<pallas_src>
import functools

import jax
import jax.numpy as jnp
from jax.experimental import pallas as pl
from jax.experimental.pallas import tpu as pltpu


def _conv3_acc(w_ref, taps):
    """sum_k w_ref[k] @ taps[k] with f32 accumulation (3 MXU pushes)."""
    acc = jnp.dot(w_ref[0], taps[0], preferred_element_type=jnp.float32)
    acc = acc + jnp.dot(w_ref[1], taps[1], preferred_element_type=jnp.float32)
    acc = acc + jnp.dot(w_ref[2], taps[2], preferred_element_type=jnp.float32)
    return acc


def _basic_block_kernel(*refs, stride, has_projection, lt, l_valid,
                        compute_dtype):
    if stride == 1:
        x_ref, h_ref = refs[0], refs[1]
        rest = refs[2:]
    else:
        xe_ref, xo_ref, he_ref, ho_ref = refs[0], refs[1], refs[2], refs[3]
        rest = refs[4:]
    if has_projection:
        w1_ref, t1_ref, w2_ref, t2_ref, ws_ref, ts_ref, o_ref = rest
    else:
        w1_ref, t1_ref, w2_ref, t2_ref, o_ref = rest

    c0 = pl.program_id(1) * lt        # global output-column offset of this tile

    # -- extended activation window: [left halo(2) | tile | right halo(2)] ------
    if stride == 1:
        x = x_ref[...]                                    # (Cin, lt) compute dt
        h = h_ref[...]                                    # (Cin, 4)
        x_ext = jnp.concatenate([h[:, 0:2], x, h[:, 2:4]], axis=1)  # (Cin, lt+4)
        # out1_ext[:, p] (global g = c0-1+p) uses x[g-1+k] -> x_ext local p+k.
        taps1 = (x_ext[:, 0:lt + 2], x_ext[:, 1:lt + 3], x_ext[:, 2:lt + 4])
        x_short = x
    else:                                                 # stride == 2
        xe, xo = xe_ref[...], xo_ref[...]                 # (Cin, lt) each
        he, ho = he_ref[...], ho_ref[...]
        xe_ext = jnp.concatenate([he[:, 0:2], xe, he[:, 2:4]], axis=1)
        xo_ext = jnp.concatenate([ho[:, 0:2], xo, ho[:, 2:4]], axis=1)
        # out1_ext[:, p] (g = c0-1+p):
        #   w1[0] @ x[2g-1] = x_odd[g-1]   -> xo_ext local p
        #   w1[1] @ x[2g]   = x_even[g]    -> xe_ext local p+1
        #   w1[2] @ x[2g+1] = x_odd[g]     -> xo_ext local p+1
        taps1 = (xo_ext[:, 0:lt + 2], xe_ext[:, 1:lt + 3], xo_ext[:, 1:lt + 3])
        x_short = xe

    # ---- conv1 (k=3, pad=1, stride) + folded BN1 + ReLU on extended window ----
    out1 = _conv3_acc(w1_ref, taps1) + t1_ref[...]        # (Cout, lt+2) f32
    out1 = jnp.maximum(out1, 0.0)
    # conv2's zero padding at the true sequence edges: out1 columns whose global
    # index g = c0 - 1 + p falls outside [0, l_valid) must be exactly zero.
    g = c0 - 1 + jax.lax.broadcasted_iota(jnp.int32, out1.shape, 1)
    out1 = jnp.where((g >= 0) & (g < l_valid), out1, 0.0)
    out1 = out1.astype(compute_dtype)                     # cast once, before taps

    # ---- conv2 (k=3, pad=1, stride=1) + folded BN2 ----------------------------
    taps2 = (out1[:, 0:lt], out1[:, 1:lt + 1], out1[:, 2:lt + 2])
    out2 = _conv3_acc(w2_ref, taps2) + t2_ref[...]        # (Cout, lt) f32

    # ---- shortcut --------------------------------------------------------------
    if has_projection:
        sc = jnp.dot(ws_ref[...], x_short, preferred_element_type=jnp.float32)
        sc = sc + ts_ref[...]
    else:
        sc = x_short.astype(jnp.float32)                  # identity

    o_ref[...] = jnp.maximum(out2 + sc, 0.0).astype(o_ref.dtype)


def _fold_bn_into_conv3(w, b, bn, compute_dtype, eps=1e-5):
    """(Cout,Cin,3) conv + bias + BN -> (3,Cout,Cin) scaled weight, (Cout,1) shift."""
    gamma, beta, mean, var = bn
    scale = gamma / jnp.sqrt(var + eps)                       # (Cout,)
    shift = beta + scale * (b - mean)                         # (Cout,)
    w_t = jnp.transpose(w, (2, 0, 1))                         # (3, Cout, Cin)
    w_t = (w_t * scale[None, :, None]).astype(compute_dtype)
    return w_t, shift.reshape(-1, 1).astype(jnp.float32)


def _fold_bn_into_conv1x1(w, b, bn, compute_dtype, eps=1e-5):
    gamma, beta, mean, var = bn
    scale = gamma / jnp.sqrt(var + eps)
    shift = beta + scale * (b - mean)
    w_m = (w[:, :, 0] * scale[:, None]).astype(compute_dtype)  # (Cout, Cin)
    return w_m, shift.reshape(-1, 1).astype(jnp.float32)


def _tile_halos(xp, lt, n_tiles):
    """Per-tile 2-column halos -> (N, n_tiles, C, 4) = [left(2) | right(2)]."""
    n, c, lp = xp.shape
    z = jnp.zeros((n, c, 1, 2), xp.dtype)
    if n_tiles > 1:
        left_i = xp[:, :, lt - 2:lp - 2].reshape(n, c, n_tiles - 1, lt)[..., :2]
        right_i = xp[:, :, lt:lp].reshape(n, c, n_tiles - 1, lt)[..., :2]
        left = jnp.concatenate([z, left_i], axis=2)
        right = jnp.concatenate([right_i, z], axis=2)
    else:
        left, right = z, z
    halo = jnp.concatenate([left, right], axis=-1)            # (N, C, T, 4)
    return jnp.transpose(halo, (0, 2, 1, 3))                  # (N, T, C, 4)


def basic_block(x_ncl, params, *, stride, compute_dtype=jnp.float32,
                out_dtype=jnp.float32, l_tile=512):
    """Pallas forward of BasicBlock.  x_ncl: (N, Cin, L) -> (N, Cout, L_out)."""
    assert stride in (1, 2), "ResNet BasicBlock uses stride 1 or 2"
    n, cin, length = x_ncl.shape
    cout = params["w1"].shape[0]
    l_out = (length - 1) // stride + 1                        # k=3, pad=1
    has_projection = (stride != 1) or (cin != cout)

    # Length tiling: single full-L tile when small, else lane-dense 128k tiles.
    # TODO(synk): on v7x (64 MiB VMEM) prefer l_tile<=512 at large channel counts.
    if l_out <= l_tile:
        lt, n_tiles = l_out, 1
    else:
        assert l_tile % 128 == 0, "l_tile must be a multiple of 128 lanes"
        lt, n_tiles = l_tile, pl.cdiv(l_out, l_tile)
    lp = lt * n_tiles

    # Activations travel in compute_dtype (bf16 halves the dominant DMA term).
    x = x_ncl.astype(compute_dtype)

    w1_t, t1 = _fold_bn_into_conv3(params["w1"], params["b1"], params["bn1"],
                                   compute_dtype)
    w2_t, t2 = _fold_bn_into_conv3(params["w2"], params["b2"], params["bn2"],
                                   compute_dtype)

    if stride == 2:
        # De-interleave once so the strided conv's taps become plain lane shifts.
        if length % 2 == 1:
            x = jnp.pad(x, ((0, 0), (0, 0), (0, 1)))
        x_even = x[:, :, 0::2]                                # (N, Cin, l_out)
        x_odd = x[:, :, 1::2]
        if lp > l_out:
            pad = ((0, 0), (0, 0), (0, lp - l_out))
            x_even = jnp.pad(x_even, pad)
            x_odd = jnp.pad(x_odd, pad)
        act_args = [x_even, x_odd,
                    _tile_halos(x_even, lt, n_tiles),
                    _tile_halos(x_odd, lt, n_tiles)]
        act_specs = [
            pl.BlockSpec((None, cin, lt), lambda b, t: (b, 0, t)),
            pl.BlockSpec((None, cin, lt), lambda b, t: (b, 0, t)),
            pl.BlockSpec((None, None, cin, 4), lambda b, t: (b, t, 0, 0)),
            pl.BlockSpec((None, None, cin, 4), lambda b, t: (b, t, 0, 0)),
        ]
    else:
        if lp > l_out:
            x = jnp.pad(x, ((0, 0), (0, 0), (0, lp - l_out)))
        act_args = [x, _tile_halos(x, lt, n_tiles)]
        act_specs = [
            pl.BlockSpec((None, cin, lt), lambda b, t: (b, 0, t)),
            pl.BlockSpec((None, None, cin, 4), lambda b, t: (b, t, 0, 0)),
        ]

    args = act_args + [w1_t, t1, w2_t, t2]
    in_specs = act_specs + [
        pl.BlockSpec(w1_t.shape, lambda b, t: (0, 0, 0)),
        pl.BlockSpec(t1.shape, lambda b, t: (0, 0)),
        pl.BlockSpec(w2_t.shape, lambda b, t: (0, 0, 0)),
        pl.BlockSpec(t2.shape, lambda b, t: (0, 0)),
    ]
    if has_projection:
        ws_m, ts = _fold_bn_into_conv1x1(params["ws"], params["bs"],
                                         params["bns"], compute_dtype)
        args += [ws_m, ts]
        in_specs += [pl.BlockSpec(ws_m.shape, lambda b, t: (0, 0)),
                     pl.BlockSpec(ts.shape, lambda b, t: (0, 0))]

    flops = 2 * n * lp * cout * (3 * cin + 3 * cout
                                 + (cin if has_projection else 0))
    bytes_accessed = (sum(int(a.size) * a.dtype.itemsize for a in args)
                      + n * cout * lp * jnp.dtype(out_dtype).itemsize)

    kernel = functools.partial(_basic_block_kernel, stride=stride,
                               has_projection=has_projection, lt=lt,
                               l_valid=l_out, compute_dtype=compute_dtype)

    out = pl.pallas_call(
        kernel,
        out_shape=jax.ShapeDtypeStruct((n, cout, lp), out_dtype),
        grid=(n, n_tiles),
        in_specs=in_specs,
        out_specs=pl.BlockSpec((None, cout, lt), lambda b, t: (b, 0, t)),
        compiler_params=pltpu.CompilerParams(
            dimension_semantics=("parallel", "parallel")),
        cost_estimate=pl.CostEstimate(flops=int(flops), transcendentals=0,
                                      bytes_accessed=int(bytes_accessed)),
    )(*args)
    return out[:, :, :l_out] if lp > l_out else out


# ----------------------------- pure-JAX reference -----------------------------
def _ref_conv1d(x_ncl, w, b, stride, padding):
    out = jax.lax.conv_general_dilated(
        x_ncl, w, window_strides=(stride,), padding=[(padding, padding)],
        dimension_numbers=("NCH", "OIH", "NCH"),
        precision=jax.lax.Precision.HIGHEST)
    return out + b[None, :, None]


def _ref_bn(x_ncl, bn, eps=1e-5):
    gamma, beta, mean, var = bn
    return ((x_ncl - mean[None, :, None]) / jnp.sqrt(var[None, :, None] + eps)
            * gamma[None, :, None] + beta[None, :, None])


def basic_block_ref(x, params, stride):
    out = jax.nn.relu(_ref_bn(_ref_conv1d(x, params["w1"], params["b1"],
                                          stride, 1), params["bn1"]))
    out = _ref_bn(_ref_conv1d(out, params["w2"], params["b2"], 1, 1),
                  params["bn2"])
    if "ws" in params:
        sc = _ref_bn(_ref_conv1d(x, params["ws"], params["bs"], stride, 0),
                     params["bns"])
    else:
        sc = x
    return jax.nn.relu(out + sc)


# --------------------------- deterministic parameters --------------------------
def _bn_init(keys, c):
    return (1.0 + 0.1 * jax.random.normal(keys[0], (c,), jnp.float32),   # gamma
            0.1 * jax.random.normal(keys[1], (c,), jnp.float32),         # beta
            0.1 * jax.random.normal(keys[2], (c,), jnp.float32),         # mean
            0.5 + jax.random.uniform(keys[3], (c,), jnp.float32))        # var


def init_params(key, in_planes, planes, stride):
    ks = jax.random.split(key, 16)
    p = {
        "w1": 0.3 * jax.random.normal(ks[0], (planes, in_planes, 3), jnp.float32),
        "b1": 0.1 * jax.random.normal(ks[1], (planes,), jnp.float32),
        "bn1": _bn_init(ks[2:6], planes),
        "w2": 0.3 * jax.random.normal(ks[6], (planes, planes, 3), jnp.float32),
        "b2": 0.1 * jax.random.normal(ks[7], (planes,), jnp.float32),
        "bn2": _bn_init(ks[8:12], planes),
    }
    if stride != 1 or in_planes != planes:
        p["ws"] = 0.3 * jax.random.normal(ks[12], (planes, in_planes, 1),
                                          jnp.float32)
        p["bs"] = 0.1 * jax.random.normal(ks[13], (planes,), jnp.float32)
        p["bns"] = _bn_init(jax.random.split(ks[14], 4), planes)
    return p


if __name__ == "__main__":
    key = jax.random.PRNGKey(0)
    kx1, kx2, kx3, kx4, kp1, kp2, kp3, kp4 = jax.random.split(key, 8)

    # Case 1: projection shortcut (8 -> 16 channels, stride 2), single tile.
    x1 = jax.random.normal(kx1, (2, 8, 16), jnp.float32)
    p1 = init_params(kp1, 8, 16, stride=2)
    y1 = basic_block(x1, p1, stride=2)
    jax.block_until_ready(y1)
    assert y1.shape == (2, 16, 8)
    assert jnp.allclose(y1, basic_block_ref(x1, p1, 2), rtol=1e-3, atol=1e-3)

    # Case 2: identity shortcut (16 -> 16 channels, stride 1), single tile.
    x2 = jax.random.normal(kx2, (2, 16, 16), jnp.float32)
    p2 = init_params(kp2, 16, 16, stride=1)
    y2 = basic_block(x2, p2, stride=1)
    jax.block_until_ready(y2)
    assert y2.shape == (2, 16, 16)
    assert jnp.allclose(y2, basic_block_ref(x2, p2, 1), rtol=1e-3, atol=1e-3)

    # Case 3: stride 1, identity shortcut, 3 lane-dense L tiles (halo check).
    x3 = jax.random.normal(kx3, (2, 16, 384), jnp.float32)
    p3 = init_params(kp3, 16, 16, stride=1)
    y3 = basic_block(x3, p3, stride=1, l_tile=128)
    jax.block_until_ready(y3)
    assert y3.shape == (2, 16, 384)
    assert jnp.allclose(y3, basic_block_ref(x3, p3, 1), rtol=1e-3, atol=1e-3)

    # Case 4: stride 2, projection, odd length, ragged last L tile.
    x4 = jax.random.normal(kx4, (2, 8, 301), jnp.float32)
    p4 = init_params(kp4, 8, 16, stride=2)
    y4 = basic_block(x4, p4, stride=2, l_tile=128)
    jax.block_until_ready(y4)
    assert y4.shape == (2, 16, 151)
    assert jnp.allclose(y4, basic_block_ref(x4, p4, 2), rtol=1e-3, atol=1e-3)

    # Case 5: bf16 activations + weights on the MXU with f32 accumulation.
    y5 = basic_block(x3, p3, stride=1, l_tile=128, compute_dtype=jnp.bfloat16)
    jax.block_until_ready(y5)
    assert y5.shape == (2, 16, 384)
    assert jnp.allclose(y5, basic_block_ref(x3, p3, 1), rtol=5e-2, atol=2.5e-1)

    print("KERNEL_OK")
</pallas_src>

<mosaic_0001>
module attributes {stable_mosaic.version = 11 : i64} {
  func.func @_basic_block_kernel(%arg0: i32, %arg1: i32, %arg2: memref<1x8x8xf32, #tpu.memory_space<vmem>>, %arg3: memref<1x8x8xf32, #tpu.memory_space<vmem>>, %arg4: memref<1x1x8x4xf32, #tpu.memory_space<vmem>>, %arg5: memref<1x1x8x4xf32, #tpu.memory_space<vmem>>, %arg6: memref<3x16x8xf32, #tpu.memory_space<vmem>>, %arg7: memref<16x1xf32, #tpu.memory_space<vmem>>, %arg8: memref<3x16x16xf32, #tpu.memory_space<vmem>>, %arg9: memref<16x1xf32, #tpu.memory_space<vmem>>, %arg10: memref<16x8xf32, #tpu.memory_space<vmem>>, %arg11: memref<16x1xf32, #tpu.memory_space<vmem>>, %arg12: memref<1x16x8xf32, #tpu.memory_space<vmem>>) attributes {dimension_semantics = [#tpu.dimension_semantics<parallel>, #tpu.dimension_semantics<parallel>], iteration_bounds = array<i64: 2, 1>, scalar_prefetch = 0 : i64, scratch_operands = 0 : i64, tpu.core_type = #tpu.core_type<tc>, window_params = [{transform_indices = @transform_0, window_bounds = array<i64: 1, 8, 8>}, {transform_indices = @transform_1, window_bounds = array<i64: 1, 8, 8>}, {transform_indices = @transform_2, window_bounds = array<i64: 1, 1, 8, 4>}, {transform_indices = @transform_3, window_bounds = array<i64: 1, 1, 8, 4>}, {pipeline_mode = #tpu.pipeline_mode<synchronous>, transform_indices = @transform_4, window_bounds = array<i64: 3, 16, 8>}, {pipeline_mode = #tpu.pipeline_mode<synchronous>, transform_indices = @transform_5, window_bounds = array<i64: 16, 1>}, {pipeline_mode = #tpu.pipeline_mode<synchronous>, transform_indices = @transform_6, window_bounds = array<i64: 3, 16, 16>}, {pipeline_mode = #tpu.pipeline_mode<synchronous>, transform_indices = @transform_7, window_bounds = array<i64: 16, 1>}, {pipeline_mode = #tpu.pipeline_mode<synchronous>, transform_indices = @transform_8, window_bounds = array<i64: 16, 8>}, {pipeline_mode = #tpu.pipeline_mode<synchronous>, transform_indices = @transform_9, window_bounds = array<i64: 16, 1>}, {transform_indices = @transform_10, window_bounds = array<i64: 1, 16, 8>}]} {
    %c8_i32 = arith.constant 8 : i32
    %0 = arith.muli %arg1, %c8_i32 : i32
    %c0 = arith.constant 0 : index
    %c0_0 = arith.constant 0 : index
    %c0_1 = arith.constant 0 : index
    %1 = vector.load %arg2[%c0, %c0_0, %c0_1] : memref<1x8x8xf32, #tpu.memory_space<vmem>>, vector<1x8x8xf32>
    %2 = vector.shape_cast %1 : vector<1x8x8xf32> to vector<8x8xf32>
    %c0_2 = arith.constant 0 : index
    %c0_3 = arith.constant 0 : index
    %c0_4 = arith.constant 0 : index
    %3 = vector.load %arg3[%c0_2, %c0_3, %c0_4] : memref<1x8x8xf32, #tpu.memory_space<vmem>>, vector<1x8x8xf32>
    %4 = vector.shape_cast %3 : vector<1x8x8xf32> to vector<8x8xf32>
    %c0_5 = arith.constant 0 : index
    %c0_6 = arith.constant 0 : index
    %c0_7 = arith.constant 0 : index
    %c0_8 = arith.constant 0 : index
    %5 = vector.load %arg4[%c0_5, %c0_6, %c0_7, %c0_8] : memref<1x1x8x4xf32, #tpu.memory_space<vmem>>, vector<1x1x8x4xf32>
    %6 = vector.shape_cast %5 : vector<1x1x8x4xf32> to vector<8x4xf32>
    %c0_9 = arith.constant 0 : index
    %c0_10 = arith.constant 0 : index
    %c0_11 = arith.constant 0 : index
    %c0_12 = arith.constant 0 : index
    %7 = vector.load %arg5[%c0_9, %c0_10, %c0_11, %c0_12] : memref<1x1x8x4xf32, #tpu.memory_space<vmem>>, vector<1x1x8x4xf32>
    %8 = vector.shape_cast %7 : vector<1x1x8x4xf32> to vector<8x4xf32>
    %9 = vector.extract_strided_slice %6 {offsets = [0, 0], sizes = [8, 2], strides = [1, 1]} : vector<8x4xf32> to vector<8x2xf32>
    %10 = vector.extract_strided_slice %6 {offsets = [0, 2], sizes = [8, 2], strides = [1, 1]} : vector<8x4xf32> to vector<8x2xf32>
    %11 = tpu.concatenate %9, %2, %10 in 1 : vector<8x2xf32>, vector<8x8xf32>, vector<8x2xf32> -> vector<8x12xf32>
    %12 = vector.extract_strided_slice %8 {offsets = [0, 0], sizes = [8, 2], strides = [1, 1]} : vector<8x4xf32> to vector<8x2xf32>
    %13 = vector.extract_strided_slice %8 {offsets = [0, 2], sizes = [8, 2], strides = [1, 1]} : vector<8x4xf32> to vector<8x2xf32>
    %14 = tpu.concatenate %12, %4, %13 in 1 : vector<8x2xf32>, vector<8x8xf32>, vector<8x2xf32> -> vector<8x12xf32>
    %15 = vector.extract_strided_slice %14 {offsets = [0, 0], sizes = [8, 10], strides = [1, 1]} : vector<8x12xf32> to vector<8x10xf32>
    %16 = vector.extract_strided_slice %11 {offsets = [0, 1], sizes = [8, 10], strides = [1, 1]} : vector<8x12xf32> to vector<8x10xf32>
    %17 = vector.extract_strided_slice %14 {offsets = [0, 1], sizes = [8, 10], strides = [1, 1]} : vector<8x12xf32> to vector<8x10xf32>
    %c0_13 = arith.constant 0 : index
    %c0_14 = arith.constant 0 : index
    %c0_15 = arith.constant 0 : index
    %18 = vector.load %arg6[%c0_13, %c0_14, %c0_15] : memref<3x16x8xf32, #tpu.memory_space<vmem>>, vector<1x16x8xf32>
    %19 = vector.shape_cast %18 : vector<1x16x8xf32> to vector<16x8xf32>
    %cst = arith.constant dense<0.000000e+00> : vector<16x10xf32>
    %20 = tpu.matmul %19, %15, %cst {dimension_numbers = #tpu.dot_dimension_numbers<[1], [0], [0], [1], [0, 0, 1, 1], [], []>} : vector<16x8xf32>, vector<8x10xf32>, vector<16x10xf32> -> vector<16x10xf32>
    %c1 = arith.constant 1 : index
    %c0_16 = arith.constant 0 : index
    %c0_17 = arith.constant 0 : index
    %21 = vector.load %arg6[%c1, %c0_16, %c0_17] : memref<3x16x8xf32, #tpu.memory_space<vmem>>, vector<1x16x8xf32>
    %22 = vector.shape_cast %21 : vector<1x16x8xf32> to vector<16x8xf32>
    %cst_18 = arith.constant dense<0.000000e+00> : vector<16x10xf32>
    %23 = tpu.matmul %22, %16, %cst_18 {dimension_numbers = #tpu.dot_dimension_numbers<[1], [0], [0], [1], [0, 0, 1, 1], [], []>} : vector<16x8xf32>, vector<8x10xf32>, vector<16x10xf32> -> vector<16x10xf32>
    %24 = arith.addf %20, %23 : vector<16x10xf32>
    %c2 = arith.constant 2 : index
    %c0_19 = arith.constant 0 : index
    %c0_20 = arith.constant 0 : index
    %25 = vector.load %arg6[%c2, %c0_19, %c0_20] : memref<3x16x8xf32, #tpu.memory_space<vmem>>, vector<1x16x8xf32>
    %26 = vector.shape_cast %25 : vector<1x16x8xf32> to vector<16x8xf32>
    %cst_21 = arith.constant dense<0.000000e+00> : vector<16x10xf32>
    %27 = tpu.matmul %26, %17, %cst_21 {dimension_numbers = #tpu.dot_dimension_numbers<[1], [0], [0], [1], [0, 0, 1, 1], [], []>} : vector<16x8xf32>, vector<8x10xf32>, vector<16x10xf32> -> vector<16x10xf32>
    %28 = arith.addf %24, %27 : vector<16x10xf32>
    %c0_22 = arith.constant 0 : index
    %c0_23 = arith.constant 0 : index
    %29 = vector.load %arg7[%c0_22, %c0_23] : memref<16x1xf32, #tpu.memory_space<vmem>>, vector<16x1xf32>
    %30 = vector.broadcast %29 : vector<16x1xf32> to vector<16x10xf32>
    %31 = arith.addf %28, %30 : vector<16x10xf32>
    %cst_24 = arith.constant 0.000000e+00 : f32
    %32 = vector.broadcast %cst_24 : f32 to vector<16x10xf32>
    %33 = arith.maximumf %31, %32 : vector<16x10xf32>
    %c1_i32 = arith.constant 1 : i32
    %34 = arith.subi %0, %c1_i32 : i32
    %35 = tpu.iota {dimensions = array<i32: 1>} : vector<16x10xi32>
    %36 = vector.broadcast %34 : i32 to vector<16x10xi32>
    %37 = arith.addi %36, %35 : vector<16x10xi32>
    %c0_i32 = arith.constant 0 : i32
    %38 = vector.broadcast %c0_i32 : i32 to vector<16x10xi32>
    %39 = arith.cmpi sge, %37, %38 : vector<16x10xi32>
    %c8_i32_25 = arith.constant 8 : i32
    %40 = vector.broadcast %c8_i32_25 : i32 to vector<16x10xi32>
    %41 = arith.cmpi slt, %37, %40 : vector<16x10xi32>
    %42 = arith.andi %39, %41 : vector<16x10xi1>
    %cst_26 = arith.constant 0.000000e+00 : f32
    %43 = vector.broadcast %cst_26 : f32 to vector<16x10xf32>
    %44 = arith.select %42, %33, %43 : vector<16x10xi1>, vector<16x10xf32>
    %45 = vector.extract_strided_slice %44 {offsets = [0, 0], sizes = [16, 8], strides = [1, 1]} : vector<16x10xf32> to vector<16x8xf32>
    %46 = vector.extract_strided_slice %44 {offsets = [0, 1], sizes = [16, 8], strides = [1, 1]} : vector<16x10xf32> to vector<16x8xf32>
    %47 = vector.extract_strided_slice %44 {offsets = [0, 2], sizes = [16, 8], strides = [1, 1]} : vector<16x10xf32> to vector<16x8xf32>
    %c0_27 = arith.constant 0 : index
    %c0_28 = arith.constant 0 : index
    %c0_29 = arith.constant 0 : index
    %48 = vector.load %arg8[%c0_27, %c0_28, %c0_29] : memref<3x16x16xf32, #tpu.memory_space<vmem>>, vector<1x16x16xf32>
    %49 = vector.shape_cast %48 : vector<1x16x16xf32> to vector<16x16xf32>
    %cst_30 = arith.constant dense<0.000000e+00> : vector<16x8xf32>
    %50 = tpu.matmul %49, %45, %cst_30 {dimension_numbers = #tpu.dot_dimension_numbers<[1], [0], [0], [1], [0, 0, 1, 1], [], []>} : vector<16x16xf32>, vector<16x8xf32>, vector<16x8xf32> -> vector<16x8xf32>
    %c1_31 = arith.constant 1 : index
    %c0_32 = arith.constant 0 : index
    %c0_33 = arith.constant 0 : index
    %51 = vector.load %arg8[%c1_31, %c0_32, %c0_33] : memref<3x16x16xf32, #tpu.memory_space<vmem>>, vector<1x16x16xf32>
    %52 = vector.shape_cast %51 : vector<1x16x16xf32> to vector<16x16xf32>
    %cst_34 = arith.constant dense<0.000000e+00> : vector<16x8xf32>
    %53 = tpu.matmul %52, %46, %cst_34 {dimension_numbers = #tpu.dot_dimension_numbers<[1], [0], [0], [1], [0, 0, 1, 1], [], []>} : vector<16x16xf32>, vector<16x8xf32>, vector<16x8xf32> -> vector<16x8xf32>
    %54 = arith.addf %50, %53 : vector<16x8xf32>
    %c2_35 = arith.constant 2 : index
    %c0_36 = arith.constant 0 : index
    %c0_37 = arith.constant 0 : index
    %55 = vector.load %arg8[%c2_35, %c0_36, %c0_37] : memref<3x16x16xf32, #tpu.memory_space<vmem>>, vector<1x16x16xf32>
    %56 = vector.shape_cast %55 : vector<1x16x16xf32> to vector<16x16xf32>
    %cst_38 = arith.constant dense<0.000000e+00> : vector<16x8xf32>
    %57 = tpu.matmul %56, %47, %cst_38 {dimension_numbers = #tpu.dot_dimension_numbers<[1], [0], [0], [1], [0, 0, 1, 1], [], []>} : vector<16x16xf32>, vector<16x8xf32>, vector<16x8xf32> -> vector<16x8xf32>
    %58 = arith.addf %54, %57 : vector<16x8xf32>
    %c0_39 = arith.constant 0 : index
    %c0_40 = arith.constant 0 : index
    %59 = vector.load %arg9[%c0_39, %c0_40] : memref<16x1xf32, #tpu.memory_space<vmem>>, vector<16x1xf32>
    %60 = vector.broadcast %59 : vector<16x1xf32> to vector<16x8xf32>
    %61 = arith.addf %58, %60 : vector<16x8xf32>
    %c0_41 = arith.constant 0 : index
    %c0_42 = arith.constant 0 : index
    %62 = vector.load %arg10[%c0_41, %c0_42] : memref<16x8xf32, #tpu.memory_space<vmem>>, vector<16x8xf32>
    %cst_43 = arith.constant dense<0.000000e+00> : vector<16x8xf32>
    %63 = tpu.matmul %62, %2, %cst_43 {dimension_numbers = #tpu.dot_dimension_numbers<[1], [0], [0], [1], [0, 0, 1, 1], [], []>} : vector<16x8xf32>, vector<8x8xf32>, vector<16x8xf32> -> vector<16x8xf32>
    %c0_44 = arith.constant 0 : index
    %c0_45 = arith.constant 0 : index
    %64 = vector.load %arg11[%c0_44, %c0_45] : memref<16x1xf32, #tpu.memory_space<vmem>>, vector<16x1xf32>
    %65 = vector.broadcast %64 : vector<16x1xf32> to vector<16x8xf32>
    %66 = arith.addf %63, %65 : vector<16x8xf32>
    %67 = arith.addf %61, %66 : vector<16x8xf32>
    %cst_46 = arith.constant 0.000000e+00 : f32
    %68 = vector.broadcast %cst_46 : f32 to vector<16x8xf32>
    %69 = arith.maximumf %67, %68 : vector<16x8xf32>
    %c0_47 = arith.constant 0 : index
    %c0_48 = arith.constant 0 : index
    %c0_49 = arith.constant 0 : index
    %70 = vector.load %arg12[%c0_47, %c0_48, %c0_49] : memref<1x16x8xf32, #tpu.memory_space<vmem>>, vector<1x16x8xf32>
    %71 = vector.shape_cast %70 : vector<1x16x8xf32> to vector<16x8xf32>
    %72 = vector.shape_cast %69 : vector<16x8xf32> to vector<1x16x8xf32>
    tpu.vector_store %arg12[%c0_47, %c0_48, %c0_49], %72 {strides = array<i32>} : memref<1x16x8xf32, #tpu.memory_space<vmem>>, vector<1x16x8xf32>,
    return
  }
  func.func @transform_0(%arg0: i32, %arg1: i32) -> (i32, i32, i32) {
    %c0_i32 = arith.constant 0 : i32
    %c0_i32_0 = arith.constant 0 : i32
    return %arg0, %c0_i32, %arg1 : i32, i32, i32
  }
  func.func @transform_1(%arg0: i32, %arg1: i32) -> (i32, i32, i32) {
    %c0_i32 = arith.constant 0 : i32
    %c0_i32_0 = arith.constant 0 : i32
    return %arg0, %c0_i32, %arg1 : i32, i32, i32
  }
  func.func @transform_2(%arg0: i32, %arg1: i32) -> (i32, i32, i32, i32) {
    %c0_i32 = arith.constant 0 : i32
    %c0_i32_0 = arith.constant 0 : i32
    %c0_i32_1 = arith.constant 0 : i32
    return %arg0, %arg1, %c0_i32, %c0_i32_0 : i32, i32, i32, i32
  }
  func.func @transform_3(%arg0: i32, %arg1: i32) -> (i32, i32, i32, i32) {
    %c0_i32 = arith.constant 0 : i32
    %c0_i32_0 = arith.constant 0 : i32
    %c0_i32_1 = arith.constant 0 : i32
    return %arg0, %arg1, %c0_i32, %c0_i32_0 : i32, i32, i32, i32
  }
  func.func @transform_4(%arg0: i32, %arg1: i32) -> (i32, i32, i32) {
    %c0_i32 = arith.constant 0 : i32
    %c0_i32_0 = arith.constant 0 : i32
    %c0_i32_1 = arith.constant 0 : i32
    %c0_i32_2 = arith.constant 0 : i32
    return %c0_i32, %c0_i32_0, %c0_i32_1 : i32, i32, i32
  }
  func.func @transform_5(%arg0: i32, %arg1: i32) -> (i32, i32) {
    %c0_i32 = arith.constant 0 : i32
    %c0_i32_0 = arith.constant 0 : i32
    %c0_i32_1 = arith.constant 0 : i32
    return %c0_i32, %c0_i32_0 : i32, i32
  }
  func.func @transform_6(%arg0: i32, %arg1: i32) -> (i32, i32, i32) {
    %c0_i32 = arith.constant 0 : i32
    %c0_i32_0 = arith.constant 0 : i32
    %c0_i32_1 = arith.constant 0 : i32
    %c0_i32_2 = arith.constant 0 : i32
    return %c0_i32, %c0_i32_0, %c0_i32_1 : i32, i32, i32
  }
  func.func @transform_7(%arg0: i32, %arg1: i32) -> (i32, i32) {
    %c0_i32 = arith.constant 0 : i32
    %c0_i32_0 = arith.constant 0 : i32
    %c0_i32_1 = arith.constant 0 : i32
    return %c0_i32, %c0_i32_0 : i32, i32
  }
  func.func @transform_8(%arg0: i32, %arg1: i32) -> (i32, i32) {
    %c0_i32 = arith.constant 0 : i32
    %c0_i32_0 = arith.constant 0 : i32
    %c0_i32_1 = arith.constant 0 : i32
    return %c0_i32, %c0_i32_0 : i32, i32
  }
  func.func @transform_9(%arg0: i32, %arg1: i32) -> (i32, i32) {
    %c0_i32 = arith.constant 0 : i32
    %c0_i32_0 = arith.constant 0 : i32
    %c0_i32_1 = arith.constant 0 : i32
    return %c0_i32, %c0_i32_0 : i32, i32
  }
  func.func @transform_10(%arg0: i32, %arg1: i32) -> (i32, i32, i32) {
    %c0_i32 = arith.constant 0 : i32
    %c0_i32_0 = arith.constant 0 : i32
    return %arg0, %c0_i32, %arg1 : i32, i32, i32
  }
}

</mosaic_0001>

<llo_original>
// kernel: tpu_custom_call.1
$region0: #{tpu_custom_call.1}
  #allocation0 [shape = 'u32[]', space=smem, size = 0x4, offset = 0x4, fixed_abs, tag = 'smem constant byte address 0x4 - core index']
  #allocation1 [shape = 'u32[72,128]{1,0:T(1,128)}', space=vmem, size = 0x9000, scoped, tag = 'internal scratch']
  %s0 = inlined_call_operand.vmem [shape: f32[2,8,8], index: 0, kind: input, shape index: {}]
  %s1 = inlined_call_operand.vmem [shape: f32[2,8,8], index: 1, kind: input, shape index: {}]
  %s2 = inlined_call_operand.vmem [shape: f32[2,1,8,4], index: 2, kind: input, shape index: {}]
  %s3 = inlined_call_operand.vmem [shape: f32[2,1,8,4], index: 3, kind: input, shape index: {}]
  %s4 = inlined_call_operand.vmem [shape: f32[3,16,8], index: 4, kind: input, shape index: {}]
  %s5 = inlined_call_operand.vmem [shape: f32[16,1], index: 5, kind: input, shape index: {}]
  %s6 = inlined_call_operand.vmem [shape: f32[3,16,16], index: 6, kind: input, shape index: {}]
  %s7 = inlined_call_operand.vmem [shape: f32[16,1], index: 7, kind: input, shape index: {}]
  %s8 = inlined_call_operand.vmem [shape: f32[16,8], index: 8, kind: input, shape index: {}]
  %s9 = inlined_call_operand.vmem [shape: f32[16,1], index: 9, kind: input, shape index: {}]
  %s10 = inlined_call_operand.vmem [shape: f32[2,16,8], index: 10, kind: output, shape index: {}]
  %s11 = sld [smem:[#allocation0]]
  $region73: #{tpu_custom_call.1} parent=0
    _
  %s13 = ssub.s32 1, %s11
  %s14 = scalar_select 0, %s13, %s11
  loop: start=0, step=1, limit=4
  $region2: #{tpu_custom_call.1} parent=0 // loop_pre_header
    _
  $region3: #{tpu_custom_call.1} parent=0 // loop_header
    %s16 = sphi 0, %s20
    %p17 = scmp.ge.s32.totalorder %s16, 4
    %s23 = sphi 0, %s35
    %s24 = sphi 0, %s31
    %s25 = sphi 0, %s23
    %s26 = sphi 0, %s24
    %s27 = sphi 0, %s25
    %s28 = sphi 0, %s26
    %s40 = sphi 0, %s42
    %s43 = sphi 0, %s40
    %s44 = sphi 0, %s43
    %s60 = sphi 0, %s44
    %s68 = sphi 0, %s70
    %s71 = sphi 0, %s68
    %s72 = sphi 0, %s71
    %s88 = sphi 0, %s72
    %s96 = sphi 0, %s98
    %s99 = sphi 0, %s96
    %s100 = sphi 0, %s99
    %s116 = sphi 0, %s100
    %s124 = sphi 0, %s126
    %s127 = sphi 0, %s124
    %s128 = sphi 0, %s127
    %s144 = sphi 0, %s128
    %s148 = sphi 0, %s148
    %s150 = sphi 0, %s148
    %s151 = sphi 0, %s150
    %s165 = sphi 0, %s151
    %s169 = sphi 0, %s169
    %s171 = sphi 0, %s169
    %s172 = sphi 0, %s171
    %s186 = sphi 0, %s172
    %s190 = sphi 0, %s190
    %s192 = sphi 0, %s190
    %s193 = sphi 0, %s192
    %s207 = sphi 0, %s193
    %s211 = sphi 0, %s211
    %s213 = sphi 0, %s211
    %s214 = sphi 0, %s213
    %s228 = sphi 0, %s214
    %s232 = sphi 0, %s232
    %s234 = sphi 0, %s232
    %s235 = sphi 0, %s234
    %s249 = sphi 0, %s235
    %s253 = sphi 0, %s253
    %s255 = sphi 0, %s253
    %s256 = sphi 0, %s255
    %s270 = sphi 0, %s256
    %s278 = sphi 0, %s280
    %s281 = sphi 0, %s278
    %s282 = sphi 0, %s281
    %s298 = sphi 0, %s282
  $region4: #{tpu_custom_call.1} parent=0 // loop_header_branch
    %19 = sbr.rel (%p17) target = $region8
  $region5: #{tpu_custom_call.1} parent=0 // loop_body
    %s21 = ssub.s32 %s16, 1
    %s22 = ssub.s32 %s16, 2
    %s29 = sadd.s32 1, %s24
    %p30 = scmp.ge.s32.totalorder %s29, 1
    %s31 = scalar_select %p30, 0, %s29
    %s32 = sadd.s32 1, %s23
    %s33 = scalar_select %p30, %s32, %s23
    %p34 = scmp.ge.s32.totalorder %s33, 2
    %s35 = scalar_select %p34, 0, %s33
    %s36 = ssub.s32 %s23, %s35
    %s37 = ssub.s32 %s24, %s31
    %s38 = sor.u32 %s36, %s37
    %p39 = scmp.eq.s32.totalorder %s38, 0
    %s41 = sadd.s32 %s40, 1
    %s42 = scalar_select %p39, %s40, %s41
    %p45 = pneg %p39
    %p46 = scmp.eq.s32.totalorder %s16, 1
    %p47 = por %p45, %p46
    %p48 = scmp.ne.s32.totalorder %s40, %s43
    %p49 = scmp.eq.s32.totalorder %s16, 0
    %p50 = por %p48, %p49
    %p51 = scmp.ne.s32.totalorder %s40, %s43
    %p52 = scmp.eq.s32.totalorder %s21, 1
    %p53 = por %p51, %p52
    %p54 = scmp.ne.s32.totalorder %s43, %s44
    %p55 = scmp.eq.s32.totalorder %s21, 0
    %p56 = por %p54, %p55
    %p57 = scmp.ne.s32.totalorder %s43, %s44
    %p58 = scmp.eq.s32.totalorder %s22, 1
    %p59 = por %p57, %p58
    %p61 = scmp.ne.s32.totalorder %s44, %s60
    %p62 = scmp.eq.s32.totalorder %s22, 0
    %p63 = por %p61, %p62
    %s64 = ssub.s32 %s23, %s35
    %s65 = ssub.s32 %s24, %s31
    %s66 = sor.u32 %s64, %s65
    %p67 = scmp.eq.s32.totalorder %s66, 0
    %s69 = sadd.s32 %s68, 1
    %s70 = scalar_select %p67, %s68, %s69
    %p73 = pneg %p67
    %p74 = scmp.eq.s32.totalorder %s16, 1
    %p75 = por %p73, %p74
    %p76 = scmp.ne.s32.totalorder %s68, %s71
    %p77 = scmp.eq.s32.totalorder %s16, 0
    %p78 = por %p76, %p77
    %p79 = scmp.ne.s32.totalorder %s68, %s71
    %p80 = scmp.eq.s32.totalorder %s21, 1
    %p81 = por %p79, %p80
    %p82 = scmp.ne.s32.totalorder %s71, %s72
    %p83 = scmp.eq.s32.totalorder %s21, 0
    %p84 = por %p82, %p83
    %p85 = scmp.ne.s32.totalorder %s71, %s72
    %p86 = scmp.eq.s32.totalorder %s22, 1
    %p87 = por %p85, %p86
    %p89 = scmp.ne.s32.totalorder %s72, %s88
    %p90 = scmp.eq.s32.totalorder %s22, 0
    %p91 = por %p89, %p90
    %s92 = ssub.s32 %s23, %s35
    %s93 = ssub.s32 %s24, %s31
    %s94 = sor.u32 %s92, %s93
    %p95 = scmp.eq.s32.totalorder %s94, 0
    %s97 = sadd.s32 %s96, 1
    %s98 = scalar_select %p95, %s96, %s97
    %p101 = pneg %p95
    %p102 = scmp.eq.s32.totalorder %s16, 1
    %p103 = por %p101, %p102
    %p104 = scmp.ne.s32.totalorder %s96, %s99
    %p105 = scmp.eq.s32.totalorder %s16, 0
    %p106 = por %p104, %p105
    %p107 = scmp.ne.s32.totalorder %s96, %s99
    %p108 = scmp.eq.s32.totalorder %s21, 1
    %p109 = por %p107, %p108
    %p110 = scmp.ne.s32.totalorder %s99, %s100
    %p111 = scmp.eq.s32.totalorder %s21, 0
    %p112 = por %p110, %p111
    %p113 = scmp.ne.s32.totalorder %s99, %s100
    %p114 = scmp.eq.s32.totalorder %s22, 1
    %p115 = por %p113, %p114
    %p117 = scmp.ne.s32.totalorder %s100, %s116
    %p118 = scmp.eq.s32.totalorder %s22, 0
    %p119 = por %p117, %p118
    %s120 = ssub.s32 %s23, %s35
    %s121 = ssub.s32 %s24, %s31
    %s122 = sor.u32 %s120, %s121
    %p123 = scmp.eq.s32.totalorder %s122, 0
    %s125 = sadd.s32 %s124, 1
    %s126 = scalar_select %p123, %s124, %s125
    %p129 = pneg %p123
    %p130 = scmp.eq.s32.totalorder %s16, 1
    %p131 = por %p129, %p130
    %p132 = scmp.ne.s32.totalorder %s124, %s127
    %p133 = scmp.eq.s32.totalorder %s16, 0
    %p134 = por %p132, %p133
    %p135 = scmp.ne.s32.totalorder %s124, %s127
    %p136 = scmp.eq.s32.totalorder %s21, 1
    %p137 = por %p135, %p136
    %p138 = scmp.ne.s32.totalorder %s127, %s128
    %p139 = scmp.eq.s32.totalorder %s21, 0
    %p140 = por %p138, %p139
    %p141 = scmp.ne.s32.totalorder %s127, %s128
    %p142 = scmp.eq.s32.totalorder %s22, 1
    %p143 = por %p141, %p142
    %p145 = scmp.ne.s32.totalorder %s128, %s144
    %p146 = scmp.eq.s32.totalorder %s22, 0
    %p147 = por %p145, %p146
    %s149 = sadd.s32 %s148, 1
    %p152 = scmp.eq.s32.totalorder %s16, 1
    %p153 = scmp.ne.s32.totalorder %s148, %s150
    %p154 = scmp.eq.s32.totalorder %s16, 0
    %p155 = por %p153, %p154
    %p156 = scmp.ne.s32.totalorder %s148, %s150
    %p157 = scmp.eq.s32.totalorder %s21, 1
    %p158 = por %p156, %p157
    %p159 = scmp.ne.s32.totalorder %s150, %s151
    %p160 = scmp.eq.s32.totalorder %s21, 0
    %p161 = por %p159, %p160
    %p162 = scmp.ne.s32.totalorder %s150, %s151
    %p163 = scmp.eq.s32.totalorder %s22, 1
    %p164 = por %p162, %p163
    %p166 = scmp.ne.s32.totalorder %s151, %s165
    %p167 = scmp.eq.s32.totalorder %s22, 0
    %p168 = por %p166, %p167
    %s170 = sadd.s32 %s169, 1
    %p173 = scmp.eq.s32.totalorder %s16, 1
    %p174 = scmp.ne.s32.totalorder %s169, %s171
    %p175 = scmp.eq.s32.totalorder %s16, 0
    %p176 = por %p174, %p175
    %p177 = scmp.ne.s32.totalorder %s169, %s171
    %p178 = scmp.eq.s32.totalorder %s21, 1
    %p179 = por %p177, %p178
    %p180 = scmp.ne.s32.totalorder %s171, %s172
    %p181 = scmp.eq.s32.totalorder %s21, 0
    %p182 = por %p180, %p181
    %p183 = scmp.ne.s32.totalorder %s171, %s172
    %p184 = scmp.eq.s32.totalorder %s22, 1
    %p185 = por %p183, %p184
    %p187 = scmp.ne.s32.totalorder %s172, %s186
    %p188 = scmp.eq.s32.totalorder %s22, 0
    %p189 = por %p187, %p188
    %s191 = sadd.s32 %s190, 1
    %p194 = scmp.eq.s32.totalorder %s16, 1
    %p195 = scmp.ne.s32.totalorder %s190, %s192
    %p196 = scmp.eq.s32.totalorder %s16, 0
    %p197 = por %p195, %p196
    %p198 = scmp.ne.s32.totalorder %s190, %s192
    %p199 = scmp.eq.s32.totalorder %s21, 1
    %p200 = por %p198, %p199
    %p201 = scmp.ne.s32.totalorder %s192, %s193
    %p202 = scmp.eq.s32.totalorder %s21, 0
    %p203 = por %p201, %p202
    %p204 = scmp.ne.s32.totalorder %s192, %s193
    %p205 = scmp.eq.s32.totalorder %s22, 1
    %p206 = por %p204, %p205
    %p208 = scmp.ne.s32.totalorder %s193, %s207
    %p209 = scmp.eq.s32.totalorder %s22, 0
    %p210 = por %p208, %p209
    %s212 = sadd.s32 %s211, 1
    %p215 = scmp.eq.s32.totalorder %s16, 1
    %p216 = scmp.ne.s32.totalorder %s211, %s213
    %p217 = scmp.eq.s32.totalorder %s16, 0
    %p218 = por %p216, %p217
    %p219 = scmp.ne.s32.totalorder %s211, %s213
    %p220 = scmp.eq.s32.totalorder %s21, 1
    %p221 = por %p219, %p220
    %p222 = scmp.ne.s32.totalorder %s213, %s214
    %p223 = scmp.eq.s32.totalorder %s21, 0
    %p224 = por %p222, %p223
    %p225 = scmp.ne.s32.totalorder %s213, %s214
    %p226 = scmp.eq.s32.totalorder %s22, 1
    %p227 = por %p225, %p226
    %p229 = scmp.ne.s32.totalorder %s214, %s228
    %p230 = scmp.eq.s32.totalorder %s22, 0
    %p231 = por %p229, %p230
    %s233 = sadd.s32 %s232, 1
    %p236 = scmp.eq.s32.totalorder %s16, 1
    %p237 = scmp.ne.s32.totalorder %s232, %s234
    %p238 = scmp.eq.s32.totalorder %s16, 0
    %p239 = por %p237, %p238
    %p240 = scmp.ne.s32.totalorder %s232, %s234
    %p241 = scmp.eq.s32.totalorder %s21, 1
    %p242 = por %p240, %p241
    %p243 = scmp.ne.s32.totalorder %s234, %s235
    %p244 = scmp.eq.s32.totalorder %s21, 0
    %p245 = por %p243, %p244
    %p246 = scmp.ne.s32.totalorder %s234, %s235
    %p247 = scmp.eq.s32.totalorder %s22, 1
    %p248 = por %p246, %p247
    %p250 = scmp.ne.s32.totalorder %s235, %s249
    %p251 = scmp.eq.s32.totalorder %s22, 0
    %p252 = por %p250, %p251
    %s254 = sadd.s32 %s253, 1
    %p257 = scmp.eq.s32.totalorder %s16, 1
    %p258 = scmp.ne.s32.totalorder %s253, %s255
    %p259 = scmp.eq.s32.totalorder %s16, 0
    %p260 = por %p258, %p259
    %p261 = scmp.ne.s32.totalorder %s253, %s255
    %p262 = scmp.eq.s32.totalorder %s21, 1
    %p263 = por %p261, %p262
    %p264 = scmp.ne.s32.totalorder %s255, %s256
    %p265 = scmp.eq.s32.totalorder %s21, 0
    %p266 = por %p264, %p265
    %p267 = scmp.ne.s32.totalorder %s255, %s256
    %p268 = scmp.eq.s32.totalorder %s22, 1
    %p269 = por %p267, %p268
    %p271 = scmp.ne.s32.totalorder %s256, %s270
    %p272 = scmp.eq.s32.totalorder %s22, 0
    %p273 = por %p271, %p272
    %s274 = ssub.s32 %s23, %s35
    %s275 = ssub.s32 %s24, %s31
    %s276 = sor.u32 %s274, %s275
    %p277 = scmp.eq.s32.totalorder %s276, 0
    %s279 = sadd.s32 %s278, 1
    %s280 = scalar_select %p277, %s278, %s279
    %p283 = pneg %p277
    %p284 = scmp.eq.s32.totalorder %s16, 1
    %p285 = por %p283, %p284
    %p286 = scmp.ne.s32.totalorder %s278, %s281
    %p287 = scmp.eq.s32.totalorder %s16, 0
    %p288 = por %p286, %p287
    %p289 = scmp.ne.s32.totalorder %s278, %s281
    %p290 = scmp.eq.s32.totalorder %s21, 1
    %p291 = por %p289, %p290
    %p292 = scmp.ne.s32.totalorder %s281, %s282
    %p293 = scmp.eq.s32.totalorder %s21, 0
    %p294 = por %p292, %p293
    %p295 = scmp.ne.s32.totalorder %s281, %s282
    %p296 = scmp.eq.s32.totalorder %s22, 1
    %p297 = por %p295, %p296
    %p299 = scmp.ne.s32.totalorder %s282, %s298
    %p300 = scmp.eq.s32.totalorder %s22, 0
    %p301 = por %p299, %p300
    %p302 = scmp.le.s32.totalorder 1, %s16
    %p303 = scmp.lt.s32.totalorder %s16, 3
    %p304 = pnand %p302, %p303
    %p305 = pneg %p304
    // Predicated region
    $region9: #{tpu_custom_call.1} parent=5 // pred_check
      _
    $region10: #{tpu_custom_call.1} parent=5 // pred_check_branch
      %307 = sbr.rel (%p304) target = $region12
    $region11: #{tpu_custom_call.1} parent=5 // pred_region
      %s308 = ssub.s32 %s16, 1
      // Predicated region
      $region13: #{tpu_custom_call.1} parent=11 // pred_check
        %p309 = pneg %p161
      $region14: #{tpu_custom_call.1} parent=11 // pred_check_branch
        %311 = sbr.rel (%p309) target = $region16
      $region15: #{tpu_custom_call.1} parent=11 // pred_region
        _
      $region16: #{tpu_custom_call.1} parent=11 // pred_fallthru
        _
      // Predicated region
      $region17: #{tpu_custom_call.1} parent=11 // pred_check
        %p312 = pneg %p182
      $region18: #{tpu_custom_call.1} parent=11 // pred_check_branch
        %314 = sbr.rel (%p312) target = $region20
      $region19: #{tpu_custom_call.1} parent=11 // pred_region
        _
      $region20: #{tpu_custom_call.1} parent=11 // pred_fallthru
        _
      // Predicated region
      $region21: #{tpu_custom_call.1} parent=11 // pred_check
        %p315 = pneg %p203
      $region22: #{tpu_custom_call.1} parent=11 // pred_check_branch
        %317 = sbr.rel (%p315) target = $region24
      $region23: #{tpu_custom_call.1} parent=11 // pred_region
        _
      $region24: #{tpu_custom_call.1} parent=11 // pred_fallthru
        _
      // Predicated region
      $region25: #{tpu_custom_call.1} parent=11 // pred_check
        %p318 = pneg %p224
      $region26: #{tpu_custom_call.1} parent=11 // pred_check_branch
        %320 = sbr.rel (%p318) target = $region28
      $region27: #{tpu_custom_call.1} parent=11 // pred_region
        _
      $region28: #{tpu_custom_call.1} parent=11 // pred_fallthru
        _
      // Predicated region
      $region29: #{tpu_custom_call.1} parent=11 // pred_check
        %p321 = pneg %p245
      $region30: #{tpu_custom_call.1} parent=11 // pred_check_branch
        %323 = sbr.rel (%p321) target = $region32
      $region31: #{tpu_custom_call.1} parent=11 // pred_region
        _
      $region32: #{tpu_custom_call.1} parent=11 // pred_fallthru
        _
      // Predicated region
      $region33: #{tpu_custom_call.1} parent=11 // pred_check
        %p324 = pneg %p266
      $region34: #{tpu_custom_call.1} parent=11 // pred_check_branch
        %326 = sbr.rel (%p324) target = $region36
      $region35: #{tpu_custom_call.1} parent=11 // pred_region
        _
      $region36: #{tpu_custom_call.1} parent=11 // pred_fallthru
        _
    $region12: #{tpu_custom_call.1} parent=5 // pred_fallthru
      _
    %p327 = scmp.lt.s32.totalorder %s16, 2
    // Predicated region
    $region37: #{tpu_custom_call.1} parent=5 // pred_check
      %p328 = pneg %p327
    $region38: #{tpu_custom_call.1} parent=5 // pred_check_branch
      %330 = sbr.rel (%p328) target = $region40
    $region39: #{tpu_custom_call.1} parent=5 // pred_region
      // Predicated region
      $region41: #{tpu_custom_call.1} parent=39 // pred_check
        %p331 = pneg %p50
      $region42: #{tpu_custom_call.1} parent=39 // pred_check_branch
        %333 = sbr.rel (%p331) target = $region44
      $region43: #{tpu_custom_call.1} parent=39 // pred_region
        %p334 = scmp.lt.s32.totalorder %s23, 1
        %s335 = scalar_select %p334, %s23, 1
        %p336 = scmp.lt.s32.totalorder %s24, 0
        %s337 = scalar_select %p336, %s24, 0
        %s338 = sadd.s32 %s337, %s335
        %s339 = smul.addr %s338, 8
        %s340 = scalar_lea.vmem %s0, %s339
      $region44: #{tpu_custom_call.1} parent=39 // pred_fallthru
        _
      // Predicated region
      $region45: #{tpu_custom_call.1} parent=39 // pred_check
        %p341 = pneg %p78
      $region46: #{tpu_custom_call.1} parent=39 // pred_check_branch
        %343 = sbr.rel (%p341) target = $region48
      $region47: #{tpu_custom_call.1} parent=39 // pred_region
        %p344 = scmp.lt.s32.totalorder %s23, 1
        %s345 = scalar_select %p344, %s23, 1
        %p346 = scmp.lt.s32.totalorder %s24, 0
        %s347 = scalar_select %p346, %s24, 0
        %s348 = sadd.s32 %s347, %s345
        %s349 = smul.addr %s348, 8
        %s350 = scalar_lea.vmem %s1, %s349
      $region48: #{tpu_custom_call.1} parent=39 // pred_fallthru
        _
      // Predicated region
      $region49: #{tpu_custom_call.1} parent=39 // pred_check
        %p351 = pneg %p106
      $region50: #{tpu_custom_call.1} parent=39 // pred_check_branch
        %353 = sbr.rel (%p351) target = $region52
      $region51: #{tpu_custom_call.1} parent=39 // pred_region
        %p354 = scmp.lt.s32.totalorder %s23, 1
        %s355 = scalar_select %p354, %s23, 1
        %p356 = scmp.lt.s32.totalorder %s24, 0
        %s357 = scalar_select %p356, %s24, 0
        %s358 = sadd.s32 %s357, %s355
        %s359 = smul.addr %s358, 8
        %s360 = scalar_lea.vmem %s2, %s359
      $region52: #{tpu_custom_call.1} parent=39 // pred_fallthru
        _
      // Predicated region
      $region53: #{tpu_custom_call.1} parent=39 // pred_check
        %p361 = pneg %p134
      $region54: #{tpu_custom_call.1} parent=39 // pred_check_branch
        %363 = sbr.rel (%p361) target = $region56
      $region55: #{tpu_custom_call.1} parent=39 // pred_region
        %p364 = scmp.lt.s32.totalorder %s23, 1
        %s365 = scalar_select %p364, %s23, 1
        %p366 = scmp.lt.s32.totalorder %s24, 0
        %s367 = scalar_select %p366, %s24, 0
        %s368 = sadd.s32 %s367, %s365
        %s369 = smul.addr %s368, 8
        %s370 = scalar_lea.vmem %s3, %s369
      $region56: #{tpu_custom_call.1} parent=39 // pred_fallthru
        _
    $region40: #{tpu_custom_call.1} parent=5 // pred_fallthru
      _
    %p371 = scmp.le.s32.totalorder 1, %s16
    %p372 = scmp.lt.s32.totalorder %s16, 3
    %p373 = pnand %p371, %p372
    %p374 = pneg %p373
    // Predicated region
    $region57: #{tpu_custom_call.1} parent=5 // pred_check
      _
    $region58: #{tpu_custom_call.1} parent=5 // pred_check_branch
      %376 = sbr.rel (%p373) target = $region60
    $region59: #{tpu_custom_call.1} parent=5 // pred_region
      %s377 = ssub.s32 %s16, 1
      %p378 = scmp.lt.s32.totalorder %s25, 1
      %s379 = scalar_select %p378, %s25, 1
      %p380 = scmp.lt.s32.totalorder %s26, 0
      %s381 = scalar_select %p380, %s26, 0
      %s382 = sadd.s32 %s381, %s379
      %s383 = smul.addr %s382, 8
      %s384 = scalar_lea.vmem %s0, %s383
      %p385 = pneg %p56
      %p386 = pneg %p53
      %p387 = scmp.lt.s32.totalorder %s25, 1
      %s388 = scalar_select %p387, %s25, 1
      %p389 = scmp.lt.s32.totalorder %s26, 0
      %s390 = scalar_select %p389, %s26, 0
      %s391 = sadd.s32 %s390, %s388
      %s392 = smul.addr %s391, 8
      %s393 = scalar_lea.vmem %s1, %s392
      %p394 = pneg %p84
      %p395 = pneg %p81
      %p396 = scmp.lt.s32.totalorder %s25, 1
      %s397 = scalar_select %p396, %s25, 1
      %p398 = scmp.lt.s32.totalorder %s26, 0
      %s399 = scalar_select %p398, %s26, 0
      %s400 = sadd.s32 %s399, %s397
      %s401 = smul.addr %s400, 8
      %s402 = scalar_lea.vmem %s2, %s401
      %p403 = pneg %p112
      %p404 = pneg %p109
      %p405 = scmp.lt.s32.totalorder %s25, 1
      %s406 = scalar_select %p405, %s25, 1
      %p407 = scmp.lt.s32.totalorder %s26, 0
      %s408 = scalar_select %p407, %s26, 0
      %s409 = sadd.s32 %s408, %s406
      %s410 = smul.addr %s409, 8
      %s411 = scalar_lea.vmem %s3, %s410
      %p412 = pneg %p140
      %p413 = pneg %p137
      %p414 = pneg %p161
      %p415 = pneg %p158
      %p416 = pneg %p182
      %p417 = pneg %p179
      %p418 = pneg %p203
      %p419 = pneg %p200
      %p420 = pneg %p224
      %p421 = pneg %p221
      %p422 = pneg %p245
      %p423 = pneg %p242
      %p424 = pneg %p266
      %p425 = pneg %p263
      %p426 = pneg %p294
      %p427 = pneg %p291
      %p428 = scmp.lt.s32.totalorder %s25, 1
      %s429 = scalar_select %p428, %s25, 1
      %p430 = scmp.lt.s32.totalorder %s26, 0
      %s431 = scalar_select %p430, %s26, 0
      %s432 = smul.addr %s429, 2
      %s433 = sadd.s32 %s431, %s432
      %s434 = smul.addr %s433, 8
      %s435 = scalar_lea.vmem %s10, %s434
      %p436 = scmp.lt.s32.totalorder %s25, 1
      %s437 = scalar_select %p436, %s25, 1
      %p438 = scmp.lt.s32.totalorder %s26, 0
      %s439 = scalar_select %p438, %s26, 0
      %s440 = sadd.s32 %s439, %s437
      %s441 = smul.addr %s440, 8
      %s442 = scalar_lea.vmem %s0, %s441
      %p443 = scmp.lt.s32.totalorder %s25, 1
      %s444 = scalar_select %p443, %s25, 1
      %p445 = scmp.lt.s32.totalorder %s26, 0
      %s446 = scalar_select %p445, %s26, 0
      %s447 = sadd.s32 %s446, %s444
      %s448 = smul.addr %s447, 8
      %s449 = scalar_lea.vmem %s1, %s448
      %p450 = scmp.lt.s32.totalorder %s25, 1
      %s451 = scalar_select %p450, %s25, 1
      %p452 = scmp.lt.s32.totalorder %s26, 0
      %s453 = scalar_select %p452, %s26, 0
      %s454 = sadd.s32 %s453, %s451
      %s455 = smul.addr %s454, 8
      %s456 = scalar_lea.vmem %s2, %s455
      %p457 = scmp.lt.s32.totalorder %s25, 1
      %s458 = scalar_select %p457, %s25, 1
      %p459 = scmp.lt.s32.totalorder %s26, 0
      %s460 = scalar_select %p459, %s26, 0
      %s461 = sadd.s32 %s460, %s458
      %s462 = smul.addr %s461, 8
      %s463 = scalar_lea.vmem %s3, %s462
      %p464 = scmp.lt.s32.totalorder %s25, 1
      %s465 = scalar_select %p464, %s25, 1
      %p466 = scmp.lt.s32.totalorder %s26, 0
      %s467 = scalar_select %p466, %s26, 0
      %s468 = smul.addr %s465, 2
      %s469 = sadd.s32 %s467, %s468
      %s470 = smul.addr %s469, 8
      %s471 = scalar_lea.vmem %s10, %s470
      %s472 = smul.u32 %s26, 8
      %v473 = vld [vmem:[%s442] sm:$0xff]
      %v474 = vld [vmem:[%s449] sm:$0xff]
      %v475 = vld [vmem:[%s456] sm:$0xff]
      %v476 = vld [vmem:[%s463] sm:$0xff]
      %478 = vrot.lane.b32.xlu0 %v473, 2
      %v479 = vpop.permute.xlu0 %478
      %482 = vrot.lane.b32.xlu0 %v475, 8
      %v483 = vpop.permute.xlu0 %482
      %vm485 = vcmask 15360
      %v486 = vsel %vm485, %v475, %v479
      %vm487 = vcmask 80896
      %v488 = vsel %vm487, %v486, %v483
      %490 = vrot.lane.b32.xlu0 %v474, 2
      %v491 = vpop.permute.xlu0 %490
      %494 = vrot.lane.b32.xlu0 %v476, 8
      %v495 = vpop.permute.xlu0 %494
      %v497 = vsel %vm485, %v476, %v491
      %v498 = vsel %vm487, %v497, %v495
      %v499 = vld [vmem:[%s4] sm:$0xff]
      %v500 = vld [vmem:[%s4 + $0x8] sm:$0xff]
      %s501 = scalar_lea.vmem %s4, 16
      %v502 = vld [vmem:[%s501] sm:$0xff]
      %v503 = vld [vmem:[%s501 + $0x8] sm:$0xff]
      %505 = vrot.lane.b32.xlu0 %v488, 127
      %v506 = vpop.permute.xlu0 %505
      %vm508 = vcmask 64512
      %v510 = vsel %vm508, %v502, 0
      %v513 = vsel %vm508, %v503, 0
      %515 = vmatpush.msra.mxu0 0.0
      %516 = vmatpush.msra.mxu0 0.0
      %517 = vmatpush.msra.mxu0 0.0
      %518 = vmatpush.msra.mxu0 0.0
      %519 = vmatpush.msra.mxu0 0.0
      %520 = vmatpush.msra.mxu0 0.0
      %521 = vmatpush.msra.mxu0 0.0
      %522 = vmatpush.msra.mxu0 0.0
      %523 = vmatpush.msra.mxu0 0.0
      %524 = vmatpush.msra.mxu0 0.0
      %525 = vmatpush.msra.mxu0 0.0
      %526 = vmatpush.msra.mxu0 0.0
      %527 = vmatpush.msra.mxu0 0.0
      %528 = vmatpush.msra.mxu0 0.0
      %529 = vmatpush.msra.mxu0 0.0
      %530 = vmatpush.msra.mxu0 %v506
      %531 = vmatmul.f32.gmra.mxu0 %v510
      %v532 = vpop.f32.mrf.mxu0
      %v533 = vadd.f32 0.0, %v532
      %534 = vmatmul.f32.gmra.mxu0 %v513
      %v535 = vpop.f32.mrf.mxu0
      %v536 = vadd.f32 0.0, %v535
      %537 = vdwg.mxu0
      %v539 = vsel %vm508, %v499, 0
      %v542 = vsel %vm508, %v500, 0
      %544 = vmatpush.msra.mxu0 0.0
      %545 = vmatpush.msra.mxu0 0.0
      %546 = vmatpush.msra.mxu0 0.0
      %547 = vmatpush.msra.mxu0 0.0
      %548 = vmatpush.msra.mxu0 0.0
      %549 = vmatpush.msra.mxu0 0.0
      %550 = vmatpush.msra.mxu0 0.0
      %551 = vmatpush.msra.mxu0 0.0
      %552 = vmatpush.msra.mxu0 0.0
      %553 = vmatpush.msra.mxu0 0.0
      %554 = vmatpush.msra.mxu0 0.0
      %555 = vmatpush.msra.mxu0 0.0
      %556 = vmatpush.msra.mxu0 0.0
      %557 = vmatpush.msra.mxu0 0.0
      %558 = vmatpush.msra.mxu0 0.0
      %559 = vmatpush.msra.mxu0 %v498
      %560 = vmatmul.f32.gmra.mxu0 %v539
      %v561 = vpop.f32.mrf.mxu0
      %v562 = vadd.f32 %v533, %v561
      %563 = vmatmul.f32.gmra.mxu0 %v542
      %v564 = vpop.f32.mrf.mxu0
      %v565 = vadd.f32 %v536, %v564
      %566 = vdwg.mxu0
      %s567 = scalar_lea.vmem %s4, 32
      %v568 = vld [vmem:[%s567] sm:$0xff]
      %v569 = vld [vmem:[%s567 + $0x8] sm:$0xff]
      %571 = vrot.lane.b32.xlu0 %v498, 127
      %v572 = vpop.permute.xlu0 %571
      %v575 = vsel %vm508, %v568, 0
      %v578 = vsel %vm508, %v569, 0
      %580 = vmatpush.msra.mxu0 0.0
      %581 = vmatpush.msra.mxu0 0.0
      %582 = vmatpush.msra.mxu0 0.0
      %583 = vmatpush.msra.mxu0 0.0
      %584 = vmatpush.msra.mxu0 0.0
      %585 = vmatpush.msra.mxu0 0.0
      %586 = vmatpush.msra.mxu0 0.0
      %587 = vmatpush.msra.mxu0 0.0
      %588 = vmatpush.msra.mxu0 0.0
      %589 = vmatpush.msra.mxu0 0.0
      %590 = vmatpush.msra.mxu0 0.0
      %591 = vmatpush.msra.mxu0 0.0
      %592 = vmatpush.msra.mxu0 0.0
      %593 = vmatpush.msra.mxu0 0.0
      %594 = vmatpush.msra.mxu0 0.0
      %595 = vmatpush.msra.mxu0 %v572
      %596 = vmatmul.f32.gmra.mxu0 %v575
      %v597 = vpop.f32.mrf.mxu0
      %v598 = vadd.f32 0.0, %v597
      %599 = vmatmul.f32.gmra.mxu0 %v578
      %v600 = vpop.f32.mrf.mxu0
      %v601 = vadd.f32 0.0, %v600
      %602 = vdwg.mxu0
      %v603 = vadd.f32 %v562, %v598
      %v604 = vadd.f32 %v565, %v601
      %v605 = vld [vmem:[%s5] sm:$0xff]
      %v606 = vld [vmem:[%s5 + $0x8] sm:$0xff]
      %608 = vset.pattern.permute.xlu0 0
      %609 = vperm.xlu0 %608, %v605
      %v610 = vpop.permute.xlu0 %609
      %613 = vset.pattern.permute.xlu0 0
      %614 = vperm.xlu0 %613, %v606
      %v615 = vpop.permute.xlu0 %614
      %v617 = vadd.f32 %v603, %v610
      %v618 = vadd.f32 %v604, %v615
      %v619 = vmax.f32 %v617, 0.0
      %v620 = vmax.f32 %v618, 0.0
      %s621 = ssub.s32 %s472, 1
      %v622 = vlaneseq
      %v623 = vand.u32 %v622, 127
      %v624 = vstv %s621
      %v625 = vadd.s32 %v624, %v623
      %vm626 = vcmp.ge.s32.totalorder %v625, 0
      %vm627 = vcmp.lt.s32.totalorder %v625, 8
      %vm628 = vmand %vm626, %vm627
      %v629 = vsel %vm628, %v619, 0.0
      %v630 = vsel %vm628, %v620, 0.0
      %v631 = vld [vmem:[%s6] sm:$0xff]
      %v632 = vld [vmem:[%s6 + $0x8] sm:$0xff]
      %s633 = scalar_lea.vmem %s6, 16
      %v634 = vld [vmem:[%s633] sm:$0xff]
      %v635 = vld [vmem:[%s633 + $0x8] sm:$0xff]
      %638 = vrot.lane.b32.xlu0 %v629, 127
      %v639 = vpop.permute.xlu0 %638
      %640 = vrot.lane.b32.xlu0 %v630, 127
      %v641 = vpop.permute.xlu0 %640
      %vm644 = vcmask 130048
      %v646 = vsel %vm644, %v634, 0
      %v649 = vsel %vm644, %v635, 0
      %651 = vmatpush.msra.mxu0 0.0
      %652 = vmatpush.msra.mxu0 0.0
      %653 = vmatpush.msra.mxu0 0.0
      %654 = vmatpush.msra.mxu0 0.0
      %655 = vmatpush.msra.mxu0 0.0
      %656 = vmatpush.msra.mxu0 0.0
      %657 = vmatpush.msra.mxu0 0.0
      %658 = vmatpush.msra.mxu0 0.0
      %659 = vmatpush.msra.mxu0 0.0
      %660 = vmatpush.msra.mxu0 0.0
      %661 = vmatpush.msra.mxu0 0.0
      %662 = vmatpush.msra.mxu0 0.0
      %663 = vmatpush.msra.mxu0 0.0
      %664 = vmatpush.msra.mxu0 0.0
      %665 = vmatpush.msra.mxu0 %v641
      %666 = vmatpush.msra.mxu0 %v639
      %667 = vmatmul.f32.gmra.mxu0 %v646
      %v668 = vpop.f32.mrf.mxu0
      %v669 = vadd.f32 0.0, %v668
      %670 = vmatmul.f32.gmra.mxu0 %v649
      %v671 = vpop.f32.mrf.mxu0
      %v672 = vadd.f32 0.0, %v671
      %673 = vdwg.mxu0
      %v675 = vsel %vm644, %v631, 0
      %v678 = vsel %vm644, %v632, 0
      %680 = vmatpush.msra.mxu0 0.0
      %681 = vmatpush.msra.mxu0 0.0
      %682 = vmatpush.msra.mxu0 0.0
      %683 = vmatpush.msra.mxu0 0.0
      %684 = vmatpush.msra.mxu0 0.0
      %685 = vmatpush.msra.mxu0 0.0
      %686 = vmatpush.msra.mxu0 0.0
      %687 = vmatpush.msra.mxu0 0.0
      %688 = vmatpush.msra.mxu0 0.0
      %689 = vmatpush.msra.mxu0 0.0
      %690 = vmatpush.msra.mxu0 0.0
      %691 = vmatpush.msra.mxu0 0.0
      %692 = vmatpush.msra.mxu0 0.0
      %693 = vmatpush.msra.mxu0 0.0
      %694 = vmatpush.msra.mxu0 %v630
      %695 = vmatpush.msra.mxu0 %v629
      %696 = vmatmul.f32.gmra.mxu0 %v675
      %v697 = vpop.f32.mrf.mxu0
      %v698 = vadd.f32 %v669, %v697
      %699 = vmatmul.f32.gmra.mxu0 %v678
      %v700 = vpop.f32.mrf.mxu0
      %v701 = vadd.f32 %v672, %v700
      %702 = vdwg.mxu0
      %s703 = scalar_lea.vmem %s6, 32
      %v704 = vld [vmem:[%s703] sm:$0xff]
      %v705 = vld [vmem:[%s703 + $0x8] sm:$0xff]
      %706 = vrot.lane.b32.xlu0 %v629, 126
      %v707 = vpop.permute.xlu0 %706
      %708 = vrot.lane.b32.xlu0 %v630, 126
      %v709 = vpop.permute.xlu0 %708
      %v713 = vsel %vm644, %v704, 0
      %v716 = vsel %vm644, %v705, 0
      %718 = vmatpush.msra.mxu0 0.0
      %719 = vmatpush.msra.mxu0 0.0
      %720 = vmatpush.msra.mxu0 0.0
      %721 = vmatpush.msra.mxu0 0.0
      %722 = vmatpush.msra.mxu0 0.0
      %723 = vmatpush.msra.mxu0 0.0
      %724 = vmatpush.msra.mxu0 0.0
      %725 = vmatpush.msra.mxu0 0.0
      %726 = vmatpush.msra.mxu0 0.0
      %727 = vmatpush.msra.mxu0 0.0
      %728 = vmatpush.msra.mxu0 0.0
      %729 = vmatpush.msra.mxu0 0.0
      %730 = vmatpush.msra.mxu0 0.0
      %731 = vmatpush.msra.mxu0 0.0
      %732 = vmatpush.msra.mxu0 %v709
      %733 = vmatpush.msra.mxu0 %v707
      %734 = vmatmul.f32.gmra.mxu0 %v713
      %v735 = vpop.f32.mrf.mxu0
      %v736 = vadd.f32 0.0, %v735
      %737 = vmatmul.f32.gmra.mxu0 %v716
      %v738 = vpop.f32.mrf.mxu0
      %v739 = vadd.f32 0.0, %v738
      %740 = vdwg.mxu0
      %v741 = vadd.f32 %v698, %v736
      %v742 = vadd.f32 %v701, %v739
      %v743 = vld [vmem:[%s7] sm:$0xff]
      %v744 = vld [vmem:[%s7 + $0x8] sm:$0xff]
      %746 = vset.pattern.permute.xlu0 0
      %747 = vperm.xlu0 %746, %v743
      %v748 = vpop.permute.xlu0 %747
      %751 = vset.pattern.permute.xlu0 0
      %752 = vperm.xlu0 %751, %v744
      %v753 = vpop.permute.xlu0 %752
      %v755 = vadd.f32 %v741, %v748
      %v756 = vadd.f32 %v742, %v753
      %v757 = vld [vmem:[%s8] sm:$0xff]
      %v758 = vld [vmem:[%s8 + $0x8] sm:$0xff]
      %v759 = vld [vmem:[%s9] sm:$0xff]
      %v760 = vld [vmem:[%s9 + $0x8] sm:$0xff]
      %762 = vset.pattern.permute.xlu0 0
      %763 = vperm.xlu0 %762, %v759
      %v764 = vpop.permute.xlu0 %763
      %767 = vset.pattern.permute.xlu0 0
      %768 = vperm.xlu0 %767, %v760
      %v769 = vpop.permute.xlu0 %768
      %v772 = vsel %vm508, %v757, 0
      %v775 = vsel %vm508, %v758, 0
      %777 = vmatpush.msra.mxu0 0.0
      %778 = vmatpush.msra.mxu0 0.0
      %779 = vmatpush.msra.mxu0 0.0
      %780 = vmatpush.msra.mxu0 0.0
      %781 = vmatpush.msra.mxu0 0.0
      %782 = vmatpush.msra.mxu0 0.0
      %783 = vmatpush.msra.mxu0 0.0
      %784 = vmatpush.msra.mxu0 0.0
      %785 = vmatpush.msra.mxu0 0.0
      %786 = vmatpush.msra.mxu0 0.0
      %787 = vmatpush.msra.mxu0 0.0
      %788 = vmatpush.msra.mxu0 0.0
      %789 = vmatpush.msra.mxu0 0.0
      %790 = vmatpush.msra.mxu0 0.0
      %791 = vmatpush.msra.mxu0 0.0
      %792 = vmatpush.msra.mxu0 %v473
      %793 = vmatmul.f32.gmra.mxu0 %v772
      %v794 = vpop.f32.mrf.mxu0
      %v795 = vadd.f32 %v764, %v794
      %796 = vmatmul.f32.gmra.mxu0 %v775
      %v797 = vpop.f32.mrf.mxu0
      %v798 = vadd.f32 %v769, %v797
      %799 = vdwg.mxu0
      %v800 = vadd.f32 %v755, %v795
      %v801 = vadd.f32 %v756, %v798
      %v802 = vmax.f32 %v800, 0.0
      %v803 = vmax.f32 %v801, 0.0
      %804 = vst.msk [vmem:[%s471] sm:$0xff] %vm508, %v802
      %805 = vst.msk [vmem:[%s471 + $0x8] sm:$0xff] %vm508, %v803
      %p806 = scmp.lt.s32.totalorder %s25, 1
      %s807 = scalar_select %p806, %s25, 1
      %p808 = scmp.lt.s32.totalorder %s26, 0
      %s809 = scalar_select %p808, %s26, 0
      %s810 = smul.addr %s807, 2
      %s811 = sadd.s32 %s809, %s810
      %s812 = smul.addr %s811, 8
      %s813 = scalar_lea.vmem %s10, %s812
      // Predicated region
      $region61: #{tpu_custom_call.1} parent=59 // pred_check
        %p814 = pneg %p291
      $region62: #{tpu_custom_call.1} parent=59 // pred_check_branch
        %816 = sbr.rel (%p814) target = $region64
      $region63: #{tpu_custom_call.1} parent=59 // pred_region
        _
      $region64: #{tpu_custom_call.1} parent=59 // pred_fallthru
        _
    $region60: #{tpu_custom_call.1} parent=5 // pred_fallthru
      _
    %p817 = scmp.le.s32.totalorder 2, %s16
    // Predicated region
    $region65: #{tpu_custom_call.1} parent=5 // pred_check
      %p818 = pneg %p817
    $region66: #{tpu_custom_call.1} parent=5 // pred_check_branch
      %820 = sbr.rel (%p818) target = $region68
    $region67: #{tpu_custom_call.1} parent=5 // pred_region
      %s821 = ssub.s32 %s16, 2
      // Predicated region
      $region69: #{tpu_custom_call.1} parent=67 // pred_check
        %p822 = pneg %p297
      $region70: #{tpu_custom_call.1} parent=67 // pred_check_branch
        %824 = sbr.rel (%p822) target = $region72
      $region71: #{tpu_custom_call.1} parent=67 // pred_region
        %p825 = scmp.lt.s32.totalorder %s27, 1
        %s826 = scalar_select %p825, %s27, 1
        %p827 = scmp.lt.s32.totalorder %s28, 0
        %s828 = scalar_select %p827, %s28, 0
        %s829 = smul.addr %s826, 2
        %s830 = sadd.s32 %s828, %s829
        %s831 = smul.addr %s830, 8
        %s832 = scalar_lea.vmem %s10, %s831
      $region72: #{tpu_custom_call.1} parent=67 // pred_fallthru
        _
    $region68: #{tpu_custom_call.1} parent=5 // pred_fallthru
      _
  $region6: #{tpu_custom_call.1} parent=0 // loop_footer
    %s20 = sadd.s32 1, %s16
  $region7: #{tpu_custom_call.1} parent=0 // loop_footer_branch
    %15 = sbr.rel target = $region3
  $region8: #{tpu_custom_call.1} parent=0 // loop_exit
    _

</llo_original>
